<compile_context>
chip_gen: v6e
topology: v6e:2x2x1
jax: 0.10.0
libtpu: 0.0.40
codegen_flags: <defaults>
</compile_context>

<pallas_src>
import functools

import jax
import jax.numpy as jnp
from jax import lax
from jax.experimental import pallas as pl
from jax.experimental.pallas import tpu as pltpu


HIDDEN = 64                  # per-network hidden width (as in the PyTorch module)
FUSED_HIDDEN = 2 * HIDDEN    # 128: predictor || target fused
NOUT = 2                     # output rows: 0 = predictor, 1 = target


def _round_up(x, m):
    return (x + m - 1) // m * m


def _chip_traits():
    """Trace-time chip detection; conservative defaults if unknown."""
    kind = ""
    try:
        kind = jax.devices()[0].device_kind.lower()
    except Exception:
        pass
    is_v7 = "v7" in kind
    # v5e has no bf16 VPU/EUP path; v6e/v7x do.
    has_bf16_eu = ("v6" in kind) or is_v7
    # v7x has 2 TensorCores: want >=2 grid steps per core so each core keeps
    # its i+1 prefetch overlapped; single-TC chips prefer fewest large steps.
    min_grid_steps = 4 if is_v7 else 1
    return has_bf16_eu, min_grid_steps


def _pick_tm(batch_pad, min_steps):
    """Largest 128-multiple batch tile (<= 2048) dividing batch_pad that still
    gives at least `min_steps` grid steps when the batch allows."""
    candidates = [tm for tm in (2048, 1024, 512, 256, 128) if batch_pad % tm == 0]
    for tm in candidates:                      # descending order
        if batch_pad // tm >= min_steps:
            return tm
    return candidates[-1]                      # batch too small: maximize steps


def rnd_fused_kernel(x_ref, w1_ref, b1_ref, w2_ref, b2_ref, w3t_ref, b3_ref,
                     out_ref, *, compute_dtype):
    """One batch tile of the fused predictor+target MLP.

    x_ref   [tm, obs_dim] f32        w1_ref [obs_dim, 128]   w2_ref [128, 128]
    w3t_ref [2, 128]                 b1/b2 [1, 128] f32      b3 [2, 1] f32
    out_ref [2, tm] f32 : row 0 = predictor, row 1 = target.
    """
    mxu_dtype = w1_ref.dtype
    x = x_ref[...].astype(mxu_dtype)           # f32 -> bf16 cast on-tile (VPU)

    # Layers 1-2: MXU matmul with f32 accumulation; bias add in f32; tanh in the
    # chip-appropriate dtype (bf16 on v6e/v7x EUP, f32 on v5e).
    z1 = jnp.dot(x, w1_ref[...], preferred_element_type=jnp.float32) + b1_ref[...]
    h1 = jnp.tanh(z1.astype(compute_dtype))
    z2 = (jnp.dot(h1.astype(mxu_dtype), w2_ref[...],
                  preferred_element_type=jnp.float32)
          + b2_ref[...])
    h2 = jnp.tanh(z2.astype(compute_dtype))

    # Readout computed directly in transposed orientation: contract the 128-wide
    # hidden dim of both operands -> [2, tm], so the batch sits on the lane axis
    # and the store is lane-dense.
    out = lax.dot_general(
        w3t_ref[...], h2.astype(mxu_dtype),
        dimension_numbers=(((1,), (1,)), ((), ())),
        preferred_element_type=jnp.float32)
    out_ref[...] = (out + b3_ref[...]).astype(out_ref.dtype)


def pack_rnd_params(pred_params, tgt_params, obs_dim, *, mxu_dtype=jnp.bfloat16):
    """Fuse predictor/target params into the kernel's packed layout (call once).

    Each params tuple is (w1 [obs,64], b1 [1,64], w2 [64,64], b2 [1,64],
    w3 [64,1], b3 [1,1]) with weights stored [in, out] (transpose of
    PyTorch nn.Linear.weight).
    """
    w1p, b1p, w2p, b2p, w3p, b3p = pred_params
    w1q, b1q, w2q, b2q, w3q, b3q = tgt_params
    assert w1p.shape[0] == obs_dim and w1q.shape[0] == obs_dim

    w1 = jnp.concatenate([w1p, w1q], axis=1)                    # [obs_dim, 128]
    b1 = jnp.concatenate([b1p, b1q], axis=1)                    # [1, 128]

    w2 = jnp.zeros((FUSED_HIDDEN, FUSED_HIDDEN), jnp.float32)   # block-diagonal
    w2 = w2.at[:HIDDEN, :HIDDEN].set(w2p).at[HIDDEN:, HIDDEN:].set(w2q)
    b2 = jnp.concatenate([b2p, b2q], axis=1)                    # [1, 128]

    w3t = jnp.zeros((NOUT, FUSED_HIDDEN), jnp.float32)          # [2, 128]
    w3t = w3t.at[0, :HIDDEN].set(w3p[:, 0]).at[1, HIDDEN:].set(w3q[:, 0])
    b3 = jnp.array([[b3p[0, 0]], [b3q[0, 0]]], jnp.float32)     # [2, 1]

    return dict(
        w1=w1.astype(mxu_dtype), b1=b1,
        w2=w2.astype(mxu_dtype), b2=b2,
        w3t=w3t.astype(mxu_dtype), b3=b3,
    )


def rnd_forward(next_obs, packed, *, tm=None):
    """Fused RND forward.  next_obs [B, obs_dim] -> (pred [B,1], tgt [B,1])."""
    B, obs_dim = next_obs.shape
    w1, b1, w2, b2, w3t, b3 = (packed[k] for k in
                               ("w1", "b1", "w2", "b2", "w3t", "b3"))
    assert w1.shape[0] == obs_dim, "packed params do not match obs_dim"
    mxu_dtype = w1.dtype

    has_bf16_eu, min_steps = _chip_traits()
    if mxu_dtype == jnp.float32:
        compute_dtype = jnp.float32                  # exact-precision path
    else:
        compute_dtype = jnp.bfloat16 if has_bf16_eu else jnp.float32

    # Only the BATCH dim is padded (to a 128 multiple) so the transposed [2, B]
    # output stays lane-dense; features stay raw f32 / unpadded (full-extent
    # last-dim block exemption).
    B_pad = _round_up(B, 128)
    x = next_obs if B_pad == B else jnp.pad(next_obs, ((0, B_pad - B), (0, 0)))

    if tm is None:
        tm = _pick_tm(B_pad, min_steps)
    assert B_pad % tm == 0, "padded batch must be a multiple of the batch tile"
    grid = (B_pad // tm,)

    def invariant(shape):
        # Whole-array block whose index never changes -> stays VMEM-resident.
        return pl.BlockSpec(shape, lambda i: (0,) * len(shape))

    flops = 2 * B_pad * (obs_dim * FUSED_HIDDEN
                         + FUSED_HIDDEN * FUSED_HIDDEN
                         + FUSED_HIDDEN * NOUT)
    transcendentals = 2 * B_pad * FUSED_HIDDEN
    bytes_accessed = int(
        x.size * x.dtype.itemsize
        + sum(a.size * a.dtype.itemsize for a in (w1, b1, w2, b2, w3t, b3))
        + NOUT * B_pad * 4)

    fused = pl.pallas_call(
        functools.partial(rnd_fused_kernel, compute_dtype=compute_dtype),
        out_shape=jax.ShapeDtypeStruct((NOUT, B_pad), jnp.float32),
        grid=grid,
        in_specs=[
            pl.BlockSpec((tm, obs_dim), lambda i: (i, 0)),   # full-extent last dim
            invariant(w1.shape), invariant(b1.shape),
            invariant(w2.shape), invariant(b2.shape),
            invariant(w3t.shape), invariant(b3.shape),
        ],
        out_specs=pl.BlockSpec((NOUT, tm), lambda i: (0, i)),
        compiler_params=pltpu.CompilerParams(
            dimension_semantics=("parallel",)),
        cost_estimate=pl.CostEstimate(
            flops=int(flops),
            transcendentals=int(transcendentals),
            bytes_accessed=bytes_accessed),
    )(x, w1, b1, w2, b2, w3t, b3)

    predict_feature = fused[0, :B].reshape(B, 1)
    target_feature = fused[1, :B].reshape(B, 1)
    return predict_feature, target_feature


def init_mlp_params(key, obs_dim, hidden=HIDDEN):
    """Synthetic stand-in for layer_init_std_bias (orthogonal init with
    std sqrt(2) / 1.0, zero bias): scaled normals with the same shapes/stds."""
    # TODO(synk): true orthogonal init (torch.nn.init.orthogonal_) not
    # reproduced; initialization is not part of the forward pass.
    k1, k2, k3 = jax.random.split(key, 3)
    w1 = jax.random.normal(k1, (obs_dim, hidden), jnp.float32) * jnp.sqrt(2.0 / obs_dim)
    b1 = jnp.zeros((1, hidden), jnp.float32)
    w2 = jax.random.normal(k2, (hidden, hidden), jnp.float32) * jnp.sqrt(2.0 / hidden)
    b2 = jnp.zeros((1, hidden), jnp.float32)
    w3 = jax.random.normal(k3, (hidden, 1), jnp.float32) / jnp.sqrt(hidden)
    b3 = jnp.zeros((1, 1), jnp.float32)
    return (w1, b1, w2, b2, w3, b3)


def reference_forward(next_obs, pred_params, tgt_params):
    """Pure-JAX f32 reference matching the PyTorch forward."""
    def mlp(x, p):
        w1, b1, w2, b2, w3, b3 = p
        h1 = jnp.tanh(x @ w1 + b1)
        h2 = jnp.tanh(h1 @ w2 + b2)
        return h2 @ w3 + b3
    return mlp(next_obs, pred_params), mlp(next_obs, tgt_params)


if __name__ == "__main__":
    key = jax.random.PRNGKey(0)
    k_obs, k_pred, k_tgt = jax.random.split(key, 3)

    B = 8          # small demo batch (padded to 128 rows inside the wrapper)
    OBS_DIM = 16   # flattened Mujoco observation dim (synthetic small size)

    next_obs = jax.random.normal(k_obs, (B, OBS_DIM), jnp.float32)
    pred_params = init_mlp_params(k_pred, OBS_DIM)
    tgt_params = init_mlp_params(k_tgt, OBS_DIM)

    ref_pred, ref_tgt = reference_forward(next_obs, pred_params, tgt_params)

    # (1) Exact-precision path: f32 MXU inputs + f32 elementwise.
    packed_f32 = pack_rnd_params(pred_params, tgt_params, OBS_DIM,
                                 mxu_dtype=jnp.float32)
    pred32, tgt32 = rnd_forward(next_obs, packed_f32)
    pred32 = jax.block_until_ready(pred32)
    tgt32 = jax.block_until_ready(tgt32)
    assert pred32.shape == (B, 1) and tgt32.shape == (B, 1)
    assert jnp.allclose(pred32, ref_pred, atol=2e-4, rtol=2e-4)
    assert jnp.allclose(tgt32, ref_tgt, atol=2e-4, rtol=2e-4)

    # (2) Default perf path: bf16 MXU inputs, f32 accumulation, chip-dependent
    #     tanh dtype (loosened tolerance per bf16 precision).
    packed = pack_rnd_params(pred_params, tgt_params, OBS_DIM)
    pred_feat, tgt_feat = rnd_forward(next_obs, packed)
    pred_feat = jax.block_until_ready(pred_feat)
    tgt_feat = jax.block_until_ready(tgt_feat)
    assert pred_feat.shape == (B, 1) and tgt_feat.shape == (B, 1)
    assert jnp.allclose(pred_feat, ref_pred, atol=5e-2, rtol=5e-2)
    assert jnp.allclose(tgt_feat, ref_tgt, atol=5e-2, rtol=5e-2)

    print("KERNEL_OK")
</pallas_src>

<mosaic_0001>
module attributes {stable_mosaic.version = 11 : i64} {
  func.func @rnd_fused_kernel(%arg0: i32, %arg1: memref<128x16xf32, #tpu.memory_space<vmem>>, %arg2: memref<16x128xf32, #tpu.memory_space<vmem>>, %arg3: memref<1x128xf32, #tpu.memory_space<vmem>>, %arg4: memref<128x128xf32, #tpu.memory_space<vmem>>, %arg5: memref<1x128xf32, #tpu.memory_space<vmem>>, %arg6: memref<2x128xf32, #tpu.memory_space<vmem>>, %arg7: memref<2x1xf32, #tpu.memory_space<vmem>>, %arg8: memref<2x128xf32, #tpu.memory_space<vmem>>) attributes {dimension_semantics = [#tpu.dimension_semantics<parallel>], iteration_bounds = array<i64: 1>, scalar_prefetch = 0 : i64, scratch_operands = 0 : i64, tpu.core_type = #tpu.core_type<tc>, window_params = [{transform_indices = @transform_0, window_bounds = array<i64: 128, 16>}, {pipeline_mode = #tpu.pipeline_mode<synchronous>, transform_indices = @transform_1, window_bounds = array<i64: 16, 128>}, {pipeline_mode = #tpu.pipeline_mode<synchronous>, transform_indices = @transform_2, window_bounds = array<i64: 1, 128>}, {pipeline_mode = #tpu.pipeline_mode<synchronous>, transform_indices = @transform_3, window_bounds = array<i64: 128, 128>}, {pipeline_mode = #tpu.pipeline_mode<synchronous>, transform_indices = @transform_4, window_bounds = array<i64: 1, 128>}, {pipeline_mode = #tpu.pipeline_mode<synchronous>, transform_indices = @transform_5, window_bounds = array<i64: 2, 128>}, {pipeline_mode = #tpu.pipeline_mode<synchronous>, transform_indices = @transform_6, window_bounds = array<i64: 2, 1>}, {transform_indices = @transform_7, window_bounds = array<i64: 2, 128>}]} {
    %c0 = arith.constant 0 : index
    %c0_0 = arith.constant 0 : index
    %0 = vector.load %arg1[%c0, %c0_0] : memref<128x16xf32, #tpu.memory_space<vmem>>, vector<128x16xf32>
    %c0_1 = arith.constant 0 : index
    %c0_2 = arith.constant 0 : index
    %1 = vector.load %arg2[%c0_1, %c0_2] : memref<16x128xf32, #tpu.memory_space<vmem>>, vector<16x128xf32>
    %cst = arith.constant dense<0.000000e+00> : vector<128x128xf32>
    %2 = tpu.matmul %0, %1, %cst {dimension_numbers = #tpu.dot_dimension_numbers<[1], [0], [0], [1], [0, 0, 1, 1], [], []>} : vector<128x16xf32>, vector<16x128xf32>, vector<128x128xf32> -> vector<128x128xf32>
    %c0_3 = arith.constant 0 : index
    %c0_4 = arith.constant 0 : index
    %3 = vector.load %arg3[%c0_3, %c0_4] : memref<1x128xf32, #tpu.memory_space<vmem>>, vector<1x128xf32>
    %4 = vector.broadcast %3 : vector<1x128xf32> to vector<128x128xf32>
    %5 = arith.addf %2, %4 : vector<128x128xf32>
    %6 = math.tanh %5 : vector<128x128xf32>
    %c0_5 = arith.constant 0 : index
    %c0_6 = arith.constant 0 : index
    %7 = vector.load %arg4[%c0_5, %c0_6] : memref<128x128xf32, #tpu.memory_space<vmem>>, vector<128x128xf32>
    %cst_7 = arith.constant dense<0.000000e+00> : vector<128x128xf32>
    %8 = tpu.matmul %6, %7, %cst_7 {dimension_numbers = #tpu.dot_dimension_numbers<[1], [0], [0], [1], [0, 0, 1, 1], [], []>} : vector<128x128xf32>, vector<128x128xf32>, vector<128x128xf32> -> vector<128x128xf32>
    %c0_8 = arith.constant 0 : index
    %c0_9 = arith.constant 0 : index
    %9 = vector.load %arg5[%c0_8, %c0_9] : memref<1x128xf32, #tpu.memory_space<vmem>>, vector<1x128xf32>
    %10 = vector.broadcast %9 : vector<1x128xf32> to vector<128x128xf32>
    %11 = arith.addf %8, %10 : vector<128x128xf32>
    %12 = math.tanh %11 : vector<128x128xf32>
    %c0_10 = arith.constant 0 : index
    %c0_11 = arith.constant 0 : index
    %13 = vector.load %arg6[%c0_10, %c0_11] : memref<2x128xf32, #tpu.memory_space<vmem>>, vector<2x128xf32>
    %cst_12 = arith.constant dense<0.000000e+00> : vector<2x128xf32>
    %14 = tpu.matmul %13, %12, %cst_12 {dimension_numbers = #tpu.dot_dimension_numbers<[1], [1], [0], [0], [0, 0, 1, 0], [], []>} : vector<2x128xf32>, vector<128x128xf32>, vector<2x128xf32> -> vector<2x128xf32>
    %c0_13 = arith.constant 0 : index
    %c0_14 = arith.constant 0 : index
    %15 = vector.load %arg7[%c0_13, %c0_14] : memref<2x1xf32, #tpu.memory_space<vmem>>, vector<2x1xf32>
    %16 = vector.broadcast %15 : vector<2x1xf32> to vector<2x128xf32>
    %17 = arith.addf %14, %16 : vector<2x128xf32>
    %c0_15 = arith.constant 0 : index
    %c0_16 = arith.constant 0 : index
    %18 = vector.load %arg8[%c0_15, %c0_16] : memref<2x128xf32, #tpu.memory_space<vmem>>, vector<2x128xf32>
    tpu.vector_store %arg8[%c0_15, %c0_16], %17 {strides = array<i32>} : memref<2x128xf32, #tpu.memory_space<vmem>>, vector<2x128xf32>,
    return
  }
  func.func @transform_0(%arg0: i32) -> (i32, i32) {
    %c0_i32 = arith.constant 0 : i32
    %c0_i32_0 = arith.constant 0 : i32
    return %arg0, %c0_i32 : i32, i32
  }
  func.func @transform_1(%arg0: i32) -> (i32, i32) {
    %c0_i32 = arith.constant 0 : i32
    %c0_i32_0 = arith.constant 0 : i32
    %c0_i32_1 = arith.constant 0 : i32
    return %c0_i32, %c0_i32_0 : i32, i32
  }
  func.func @transform_2(%arg0: i32) -> (i32, i32) {
    %c0_i32 = arith.constant 0 : i32
    %c0_i32_0 = arith.constant 0 : i32
    %c0_i32_1 = arith.constant 0 : i32
    return %c0_i32, %c0_i32_0 : i32, i32
  }
  func.func @transform_3(%arg0: i32) -> (i32, i32) {
    %c0_i32 = arith.constant 0 : i32
    %c0_i32_0 = arith.constant 0 : i32
    %c0_i32_1 = arith.constant 0 : i32
    return %c0_i32, %c0_i32_0 : i32, i32
  }
  func.func @transform_4(%arg0: i32) -> (i32, i32) {
    %c0_i32 = arith.constant 0 : i32
    %c0_i32_0 = arith.constant 0 : i32
    %c0_i32_1 = arith.constant 0 : i32
    return %c0_i32, %c0_i32_0 : i32, i32
  }
  func.func @transform_5(%arg0: i32) -> (i32, i32) {
    %c0_i32 = arith.constant 0 : i32
    %c0_i32_0 = arith.constant 0 : i32
    %c0_i32_1 = arith.constant 0 : i32
    return %c0_i32, %c0_i32_0 : i32, i32
  }
  func.func @transform_6(%arg0: i32) -> (i32, i32) {
    %c0_i32 = arith.constant 0 : i32
    %c0_i32_0 = arith.constant 0 : i32
    %c0_i32_1 = arith.constant 0 : i32
    return %c0_i32, %c0_i32_0 : i32, i32
  }
  func.func @transform_7(%arg0: i32) -> (i32, i32) {
    %c0_i32 = arith.constant 0 : i32
    %c0_i32_0 = arith.constant 0 : i32
    return %c0_i32, %arg0 : i32, i32
  }
}

</mosaic_0001>

<llo_original>
// kernel: tpu_custom_call.1
$region0: #{tpu_custom_call.1}
  #allocation0 [shape = 'u32[]', space=smem, size = 0x4, offset = 0x4, fixed_abs, tag = 'smem constant byte address 0x4 - core index']
  #allocation1 [shape = 'u32[144,128]{1,0:T(1,128)}', space=vmem, size = 0x12000, scoped, tag = 'internal scratch']
  %s0 = inlined_call_operand.vmem [shape: f32[128,16], index: 0, kind: input, shape index: {}]
  %s1 = inlined_call_operand.vmem [shape: f32[16,128], index: 1, kind: input, shape index: {}]
  %s2 = inlined_call_operand.vmem [shape: f32[1,128], index: 2, kind: input, shape index: {}]
  %s3 = inlined_call_operand.vmem [shape: f32[128,128], index: 3, kind: input, shape index: {}]
  %s4 = inlined_call_operand.vmem [shape: f32[1,128], index: 4, kind: input, shape index: {}]
  %s5 = inlined_call_operand.vmem [shape: f32[2,128], index: 5, kind: input, shape index: {}]
  %s6 = inlined_call_operand.vmem [shape: f32[2,1], index: 6, kind: input, shape index: {}]
  %s7 = inlined_call_operand.hbm [shape: f32[2,128], index: 7, kind: output, shape index: {}]
  %s8 = sld [smem:[#allocation0]]
  $region38: #{tpu_custom_call.1} parent=0
    _
  %s10 = ssub.s32 1, %s8
  %s11 = scalar_select 0, %s10, %s8
  $region1: #{tpu_custom_call.1} parent=0
    #allocation2 [shape = 'u8[1024]{0}', space=vmem, size = 0x400, scoped, tag = 'output window, operand 0, single buffered']
    #allocation3 [shape = 's32[1]{0}', space=sflag, size = 0x4, scoped, tag = 'scoped memory for tpu_custom_call.1']
    %12 = vsyncpa [#allocation3], 0
    // Predicated region
    $region2: #{tpu_custom_call.1} parent=1 // pred_check
      _
    $region3: #{tpu_custom_call.1} parent=1 // pred_check_branch
      %14 = sbr.rel (0) target = $region5
    $region4: #{tpu_custom_call.1} parent=1 // pred_region
      _
    $region5: #{tpu_custom_call.1} parent=1 // pred_fallthru
      _
    // Predicated region
    $region6: #{tpu_custom_call.1} parent=1 // pred_check
      _
    $region7: #{tpu_custom_call.1} parent=1 // pred_check_branch
      %16 = sbr.rel (0) target = $region9
    $region8: #{tpu_custom_call.1} parent=1 // pred_region
      _
    $region9: #{tpu_custom_call.1} parent=1 // pred_fallthru
      _
    // Predicated region
    $region10: #{tpu_custom_call.1} parent=1 // pred_check
      _
    $region11: #{tpu_custom_call.1} parent=1 // pred_check_branch
      %18 = sbr.rel (0) target = $region13
    $region12: #{tpu_custom_call.1} parent=1 // pred_region
      _
    $region13: #{tpu_custom_call.1} parent=1 // pred_fallthru
      _
    // Predicated region
    $region14: #{tpu_custom_call.1} parent=1 // pred_check
      _
    $region15: #{tpu_custom_call.1} parent=1 // pred_check_branch
      %20 = sbr.rel (0) target = $region17
    $region16: #{tpu_custom_call.1} parent=1 // pred_region
      _
    $region17: #{tpu_custom_call.1} parent=1 // pred_fallthru
      _
    // Predicated region
    $region18: #{tpu_custom_call.1} parent=1 // pred_check
      _
    $region19: #{tpu_custom_call.1} parent=1 // pred_check_branch
      %22 = sbr.rel (0) target = $region21
    $region20: #{tpu_custom_call.1} parent=1 // pred_region
      _
    $region21: #{tpu_custom_call.1} parent=1 // pred_fallthru
      _
    // Predicated region
    $region22: #{tpu_custom_call.1} parent=1 // pred_check
      _
    $region23: #{tpu_custom_call.1} parent=1 // pred_check_branch
      %24 = sbr.rel (0) target = $region25
    $region24: #{tpu_custom_call.1} parent=1 // pred_region
      _
    $region25: #{tpu_custom_call.1} parent=1 // pred_fallthru
      _
    // Predicated region
    $region26: #{tpu_custom_call.1} parent=1 // pred_check
      _
    $region27: #{tpu_custom_call.1} parent=1 // pred_check_branch
      %26 = sbr.rel (0) target = $region29
    $region28: #{tpu_custom_call.1} parent=1 // pred_region
      _
    $region29: #{tpu_custom_call.1} parent=1 // pred_fallthru
      _
    %v27 = vld [vmem:[%s0] sm:$0xff]
    %v28 = vld [vmem:[%s0 + $0x8] sm:$0xff]
    %v29 = vld [vmem:[%s0 + $0x10] sm:$0xff]
    %v30 = vld [vmem:[%s0 + $0x18] sm:$0xff]
    %v31 = vld [vmem:[%s0 + $0x20] sm:$0xff]
    %v32 = vld [vmem:[%s0 + $0x28] sm:$0xff]
    %v33 = vld [vmem:[%s0 + $0x30] sm:$0xff]
    %v34 = vld [vmem:[%s0 + $0x38] sm:$0xff]
    %v35 = vld [vmem:[%s0 + $0x40] sm:$0xff]
    %v36 = vld [vmem:[%s0 + $0x48] sm:$0xff]
    %v37 = vld [vmem:[%s0 + $0x50] sm:$0xff]
    %v38 = vld [vmem:[%s0 + $0x58] sm:$0xff]
    %v39 = vld [vmem:[%s0 + $0x60] sm:$0xff]
    %v40 = vld [vmem:[%s0 + $0x68] sm:$0xff]
    %v41 = vld [vmem:[%s0 + $0x70] sm:$0xff]
    %v42 = vld [vmem:[%s0 + $0x78] sm:$0xff]
    %v43 = vld [vmem:[%s1] sm:$0xff]
    %v44 = vld [vmem:[%s1 + $0x8] sm:$0xff]
    %v45 = vld [vmem:[%s2] sm:$0x1]
    %v47 = vlaneseq
    %v48 = vshrl.u32 %v47, 7
    %v49 = vsub.s32 0, %v48
    %v50 = vrot.slane %v45, %v49
    %vm52 = vcmask 130048
    %v54 = vsel %vm52, %v27, 0
    %v57 = vsel %vm52, %v28, 0
    %v60 = vsel %vm52, %v29, 0
    %v63 = vsel %vm52, %v30, 0
    %v66 = vsel %vm52, %v31, 0
    %v69 = vsel %vm52, %v32, 0
    %v72 = vsel %vm52, %v33, 0
    %v75 = vsel %vm52, %v34, 0
    %v78 = vsel %vm52, %v35, 0
    %v81 = vsel %vm52, %v36, 0
    %v84 = vsel %vm52, %v37, 0
    %v87 = vsel %vm52, %v38, 0
    %v90 = vsel %vm52, %v39, 0
    %v93 = vsel %vm52, %v40, 0
    %v96 = vsel %vm52, %v41, 0
    %v99 = vsel %vm52, %v42, 0
    %101 = vmatprep.subr.mxu0 0.0
    %102 = vmatpush1.msra.mxu0 0.0
    %103 = vmatprep.subr.mxu0 0.0
    %104 = vmatpush1.msra.mxu0 0.0
    %105 = vmatprep.subr.mxu0 0.0
    %106 = vmatpush1.msra.mxu0 0.0
    %107 = vmatprep.subr.mxu0 0.0
    %108 = vmatpush1.msra.mxu0 0.0
    %109 = vmatprep.subr.mxu0 0.0
    %110 = vmatpush1.msra.mxu0 0.0
    %111 = vmatprep.subr.mxu0 0.0
    %112 = vmatpush1.msra.mxu0 0.0
    %113 = vmatprep.subr.mxu0 0.0
    %114 = vmatpush1.msra.mxu0 0.0
    %115 = vmatprep.subr.mxu0 0.0
    %116 = vmatpush1.msra.mxu0 0.0
    %117 = vmatprep.subr.mxu0 0.0
    %118 = vmatpush1.msra.mxu0 0.0
    %119 = vmatprep.subr.mxu0 0.0
    %120 = vmatpush1.msra.mxu0 0.0
    %121 = vmatprep.subr.mxu0 0.0
    %122 = vmatpush1.msra.mxu0 0.0
    %123 = vmatprep.subr.mxu0 0.0
    %124 = vmatpush1.msra.mxu0 0.0
    %125 = vmatprep.subr.mxu0 0.0
    %126 = vmatpush1.msra.mxu0 0.0
    %127 = vmatprep.subr.mxu0 0.0
    %128 = vmatpush1.msra.mxu0 0.0
    %129 = vmatprep.subr.mxu0 0.0
    %130 = vmatpush1.msra.mxu0 %v44
    %131 = vmatprep.subr.mxu0 0.0
    %132 = vmatpush1.msra.mxu0 %v43
    %133 = vmatprep.subr.mxu0 0.0
    %134 = vmatpush2.msra.mxu0 0.0
    %135 = vmatprep.subr.mxu0 0.0
    %136 = vmatpush2.msra.mxu0 0.0
    %137 = vmatprep.subr.mxu0 0.0
    %138 = vmatpush2.msra.mxu0 0.0
    %139 = vmatprep.subr.mxu0 0.0
    %140 = vmatpush2.msra.mxu0 0.0
    %141 = vmatprep.subr.mxu0 0.0
    %142 = vmatpush2.msra.mxu0 0.0
    %143 = vmatprep.subr.mxu0 0.0
    %144 = vmatpush2.msra.mxu0 0.0
    %145 = vmatprep.subr.mxu0 0.0
    %146 = vmatpush2.msra.mxu0 0.0
    %147 = vmatprep.subr.mxu0 0.0
    %148 = vmatpush2.msra.mxu0 0.0
    %149 = vmatprep.subr.mxu0 0.0
    %150 = vmatpush2.msra.mxu0 0.0
    %151 = vmatprep.subr.mxu0 0.0
    %152 = vmatpush2.msra.mxu0 0.0
    %153 = vmatprep.subr.mxu0 0.0
    %154 = vmatpush2.msra.mxu0 0.0
    %155 = vmatprep.subr.mxu0 0.0
    %156 = vmatpush2.msra.mxu0 0.0
    %157 = vmatprep.subr.mxu0 0.0
    %158 = vmatpush2.msra.mxu0 0.0
    %159 = vmatprep.subr.mxu0 0.0
    %160 = vmatpush2.msra.mxu0 0.0
    %161 = vmatprep.subr.mxu0 0.0
    %162 = vmatpush2.msra.mxu0 0.0
    %163 = vmatprep.subr.mxu0 0.0
    %164 = vmatpush2.msra.mxu0 0.0
    %165 = vmatprep.mubr.f32.mxu0 0.0
    %166 = vmatmul.mubr.f32.gmra.mxu0 %v54
    %v167 = vpop.f32.mrf.mxu0
    %v168 = vadd.f32 %v50, %v167
    %v169 = vpop.f32.mrf.mxu0
    %170 = vmatprep.mubr.f32.mxu0 0.0
    %171 = vmatmul.mubr.f32.gmra.mxu0 %v57
    %v172 = vpop.f32.mrf.mxu0
    %v173 = vadd.f32 %v50, %v172
    %v174 = vpop.f32.mrf.mxu0
    %175 = vmatprep.mubr.f32.mxu0 0.0
    %176 = vmatmul.mubr.f32.gmra.mxu0 %v60
    %v177 = vpop.f32.mrf.mxu0
    %v178 = vadd.f32 %v50, %v177
    %v179 = vpop.f32.mrf.mxu0
    %180 = vmatprep.mubr.f32.mxu0 0.0
    %181 = vmatmul.mubr.f32.gmra.mxu0 %v63
    %v182 = vpop.f32.mrf.mxu0
    %v183 = vadd.f32 %v50, %v182
    %v184 = vpop.f32.mrf.mxu0
    %185 = vmatprep.mubr.f32.mxu0 0.0
    %186 = vmatmul.mubr.f32.gmra.mxu0 %v66
    %v187 = vpop.f32.mrf.mxu0
    %v188 = vadd.f32 %v50, %v187
    %v189 = vpop.f32.mrf.mxu0
    %190 = vmatprep.mubr.f32.mxu0 0.0
    %191 = vmatmul.mubr.f32.gmra.mxu0 %v69
    %v192 = vpop.f32.mrf.mxu0
    %v193 = vadd.f32 %v50, %v192
    %v194 = vpop.f32.mrf.mxu0
    %195 = vmatprep.mubr.f32.mxu0 0.0
    %196 = vmatmul.mubr.f32.gmra.mxu0 %v72
    %v197 = vpop.f32.mrf.mxu0
    %v198 = vadd.f32 %v50, %v197
    %v199 = vpop.f32.mrf.mxu0
    %200 = vmatprep.mubr.f32.mxu0 0.0
    %201 = vmatmul.mubr.f32.gmra.mxu0 %v75
    %v202 = vpop.f32.mrf.mxu0
    %v203 = vadd.f32 %v50, %v202
    %v204 = vpop.f32.mrf.mxu0
    %205 = vmatprep.mubr.f32.mxu0 0.0
    %206 = vmatmul.mubr.f32.gmra.mxu0 %v78
    %v207 = vpop.f32.mrf.mxu0
    %v208 = vadd.f32 %v50, %v207
    %v209 = vpop.f32.mrf.mxu0
    %210 = vmatprep.mubr.f32.mxu0 0.0
    %211 = vmatmul.mubr.f32.gmra.mxu0 %v81
    %v212 = vpop.f32.mrf.mxu0
    %v213 = vadd.f32 %v50, %v212
    %v214 = vpop.f32.mrf.mxu0
    %215 = vmatprep.mubr.f32.mxu0 0.0
    %216 = vmatmul.mubr.f32.gmra.mxu0 %v84
    %v217 = vpop.f32.mrf.mxu0
    %v218 = vadd.f32 %v50, %v217
    %v219 = vpop.f32.mrf.mxu0
    %220 = vmatprep.mubr.f32.mxu0 0.0
    %221 = vmatmul.mubr.f32.gmra.mxu0 %v87
    %v222 = vpop.f32.mrf.mxu0
    %v223 = vadd.f32 %v50, %v222
    %v224 = vpop.f32.mrf.mxu0
    %225 = vmatprep.mubr.f32.mxu0 0.0
    %226 = vmatmul.mubr.f32.gmra.mxu0 %v90
    %v227 = vpop.f32.mrf.mxu0
    %v228 = vadd.f32 %v50, %v227
    %v229 = vpop.f32.mrf.mxu0
    %230 = vmatprep.mubr.f32.mxu0 0.0
    %231 = vmatmul.mubr.f32.gmra.mxu0 %v93
    %v232 = vpop.f32.mrf.mxu0
    %v233 = vadd.f32 %v50, %v232
    %v234 = vpop.f32.mrf.mxu0
    %235 = vmatprep.mubr.f32.mxu0 0.0
    %236 = vmatmul.mubr.f32.gmra.mxu0 %v96
    %v237 = vpop.f32.mrf.mxu0
    %v238 = vadd.f32 %v50, %v237
    %v239 = vpop.f32.mrf.mxu0
    %240 = vmatprep.mubr.f32.mxu0 0.0
    %241 = vmatmul.mubr.f32.gmra.mxu0 %v99
    %v242 = vpop.f32.mrf.mxu0
    %v243 = vadd.f32 %v50, %v242
    %v244 = vpop.f32.mrf.mxu0
    %245 = vdwg.mxu0
    %v246 = vtanh.pop %v168
    %v247 = vtanh.pop %v173
    %v248 = vtanh.pop %v178
    %v249 = vtanh.pop %v183
    %v250 = vtanh.pop %v188
    %v251 = vtanh.pop %v193
    %v252 = vtanh.pop %v198
    %v253 = vtanh.pop %v203
    %v254 = vtanh.pop %v208
    %v255 = vtanh.pop %v213
    %v256 = vtanh.pop %v218
    %v257 = vtanh.pop %v223
    %v258 = vtanh.pop %v228
    %v259 = vtanh.pop %v233
    %v260 = vtanh.pop %v238
    %v261 = vtanh.pop %v243
    %v262 = vld [vmem:[%s3] sm:$0xff]
    %v263 = vld [vmem:[%s3 + $0x8] sm:$0xff]
    %v264 = vld [vmem:[%s3 + $0x10] sm:$0xff]
    %v265 = vld [vmem:[%s3 + $0x18] sm:$0xff]
    %v266 = vld [vmem:[%s3 + $0x20] sm:$0xff]
    %v267 = vld [vmem:[%s3 + $0x28] sm:$0xff]
    %v268 = vld [vmem:[%s3 + $0x30] sm:$0xff]
    %v269 = vld [vmem:[%s3 + $0x38] sm:$0xff]
    %v270 = vld [vmem:[%s3 + $0x40] sm:$0xff]
    %v271 = vld [vmem:[%s3 + $0x48] sm:$0xff]
    %v272 = vld [vmem:[%s3 + $0x50] sm:$0xff]
    %v273 = vld [vmem:[%s3 + $0x58] sm:$0xff]
    %v274 = vld [vmem:[%s3 + $0x60] sm:$0xff]
    %v275 = vld [vmem:[%s3 + $0x68] sm:$0xff]
    %v276 = vld [vmem:[%s3 + $0x70] sm:$0xff]
    %v277 = vld [vmem:[%s3 + $0x78] sm:$0xff]
    %v278 = vld [vmem:[%s4] sm:$0x1]
    %v280 = vlaneseq
    %v281 = vshrl.u32 %v280, 7
    %v282 = vsub.s32 0, %v281
    %v283 = vrot.slane %v278, %v282
    %285 = vmatprep.subr.mxu0 0.0
    %286 = vmatpush1.msra.mxu0 %v277
    %287 = vmatprep.subr.mxu0 0.0
    %288 = vmatpush1.msra.mxu0 %v276
    %289 = vmatprep.subr.mxu0 0.0
    %290 = vmatpush1.msra.mxu0 %v275
    %291 = vmatprep.subr.mxu0 0.0
    %292 = vmatpush1.msra.mxu0 %v274
    %293 = vmatprep.subr.mxu0 0.0
    %294 = vmatpush1.msra.mxu0 %v273
    %295 = vmatprep.subr.mxu0 0.0
    %296 = vmatpush1.msra.mxu0 %v272
    %297 = vmatprep.subr.mxu0 0.0
    %298 = vmatpush1.msra.mxu0 %v271
    %299 = vmatprep.subr.mxu0 0.0
    %300 = vmatpush1.msra.mxu0 %v270
    %301 = vmatprep.subr.mxu0 0.0
    %302 = vmatpush1.msra.mxu0 %v269
    %303 = vmatprep.subr.mxu0 0.0
    %304 = vmatpush1.msra.mxu0 %v268
    %305 = vmatprep.subr.mxu0 0.0
    %306 = vmatpush1.msra.mxu0 %v267
    %307 = vmatprep.subr.mxu0 0.0
    %308 = vmatpush1.msra.mxu0 %v266
    %309 = vmatprep.subr.mxu0 0.0
    %310 = vmatpush1.msra.mxu0 %v265
    %311 = vmatprep.subr.mxu0 0.0
    %312 = vmatpush1.msra.mxu0 %v264
    %313 = vmatprep.subr.mxu0 0.0
    %314 = vmatpush1.msra.mxu0 %v263
    %315 = vmatprep.subr.mxu0 0.0
    %316 = vmatpush1.msra.mxu0 %v262
    %317 = vmatprep.subr.mxu0 0.0
    %318 = vmatpush2.msra.mxu0 0.0
    %319 = vmatprep.subr.mxu0 0.0
    %320 = vmatpush2.msra.mxu0 0.0
    %321 = vmatprep.subr.mxu0 0.0
    %322 = vmatpush2.msra.mxu0 0.0
    %323 = vmatprep.subr.mxu0 0.0
    %324 = vmatpush2.msra.mxu0 0.0
    %325 = vmatprep.subr.mxu0 0.0
    %326 = vmatpush2.msra.mxu0 0.0
    %327 = vmatprep.subr.mxu0 0.0
    %328 = vmatpush2.msra.mxu0 0.0
    %329 = vmatprep.subr.mxu0 0.0
    %330 = vmatpush2.msra.mxu0 0.0
    %331 = vmatprep.subr.mxu0 0.0
    %332 = vmatpush2.msra.mxu0 0.0
    %333 = vmatprep.subr.mxu0 0.0
    %334 = vmatpush2.msra.mxu0 0.0
    %335 = vmatprep.subr.mxu0 0.0
    %336 = vmatpush2.msra.mxu0 0.0
    %337 = vmatprep.subr.mxu0 0.0
    %338 = vmatpush2.msra.mxu0 0.0
    %339 = vmatprep.subr.mxu0 0.0
    %340 = vmatpush2.msra.mxu0 0.0
    %341 = vmatprep.subr.mxu0 0.0
    %342 = vmatpush2.msra.mxu0 0.0
    %343 = vmatprep.subr.mxu0 0.0
    %344 = vmatpush2.msra.mxu0 0.0
    %345 = vmatprep.subr.mxu0 0.0
    %346 = vmatpush2.msra.mxu0 0.0
    %347 = vmatprep.subr.mxu0 0.0
    %348 = vmatpush2.msra.mxu0 0.0
    %349 = vmatprep.mubr.f32.mxu0 0.0
    %350 = vmatmul.mubr.f32.gmra.mxu0 %v246
    %v351 = vpop.f32.mrf.mxu0
    %v352 = vadd.f32 %v283, %v351
    %v353 = vpop.f32.mrf.mxu0
    %354 = vmatprep.mubr.f32.mxu0 0.0
    %355 = vmatmul.mubr.f32.gmra.mxu0 %v247
    %v356 = vpop.f32.mrf.mxu0
    %v357 = vadd.f32 %v283, %v356
    %v358 = vpop.f32.mrf.mxu0
    %359 = vmatprep.mubr.f32.mxu0 0.0
    %360 = vmatmul.mubr.f32.gmra.mxu0 %v248
    %v361 = vpop.f32.mrf.mxu0
    %v362 = vadd.f32 %v283, %v361
    %v363 = vpop.f32.mrf.mxu0
    %364 = vmatprep.mubr.f32.mxu0 0.0
    %365 = vmatmul.mubr.f32.gmra.mxu0 %v249
    %v366 = vpop.f32.mrf.mxu0
    %v367 = vadd.f32 %v283, %v366
    %v368 = vpop.f32.mrf.mxu0
    %369 = vmatprep.mubr.f32.mxu0 0.0
    %370 = vmatmul.mubr.f32.gmra.mxu0 %v250
    %v371 = vpop.f32.mrf.mxu0
    %v372 = vadd.f32 %v283, %v371
    %v373 = vpop.f32.mrf.mxu0
    %374 = vmatprep.mubr.f32.mxu0 0.0
    %375 = vmatmul.mubr.f32.gmra.mxu0 %v251
    %v376 = vpop.f32.mrf.mxu0
    %v377 = vadd.f32 %v283, %v376
    %v378 = vpop.f32.mrf.mxu0
    %379 = vmatprep.mubr.f32.mxu0 0.0
    %380 = vmatmul.mubr.f32.gmra.mxu0 %v252
    %v381 = vpop.f32.mrf.mxu0
    %v382 = vadd.f32 %v283, %v381
    %v383 = vpop.f32.mrf.mxu0
    %384 = vmatprep.mubr.f32.mxu0 0.0
    %385 = vmatmul.mubr.f32.gmra.mxu0 %v253
    %v386 = vpop.f32.mrf.mxu0
    %v387 = vadd.f32 %v283, %v386
    %v388 = vpop.f32.mrf.mxu0
    %389 = vmatprep.mubr.f32.mxu0 0.0
    %390 = vmatmul.mubr.f32.gmra.mxu0 %v254
    %v391 = vpop.f32.mrf.mxu0
    %v392 = vadd.f32 %v283, %v391
    %v393 = vpop.f32.mrf.mxu0
    %394 = vmatprep.mubr.f32.mxu0 0.0
    %395 = vmatmul.mubr.f32.gmra.mxu0 %v255
    %v396 = vpop.f32.mrf.mxu0
    %v397 = vadd.f32 %v283, %v396
    %v398 = vpop.f32.mrf.mxu0
    %399 = vmatprep.mubr.f32.mxu0 0.0
    %400 = vmatmul.mubr.f32.gmra.mxu0 %v256
    %v401 = vpop.f32.mrf.mxu0
    %v402 = vadd.f32 %v283, %v401
    %v403 = vpop.f32.mrf.mxu0
    %404 = vmatprep.mubr.f32.mxu0 0.0
    %405 = vmatmul.mubr.f32.gmra.mxu0 %v257
    %v406 = vpop.f32.mrf.mxu0
    %v407 = vadd.f32 %v283, %v406
    %v408 = vpop.f32.mrf.mxu0
    %409 = vmatprep.mubr.f32.mxu0 0.0
    %410 = vmatmul.mubr.f32.gmra.mxu0 %v258
    %v411 = vpop.f32.mrf.mxu0
    %v412 = vadd.f32 %v283, %v411
    %v413 = vpop.f32.mrf.mxu0
    %414 = vmatprep.mubr.f32.mxu0 0.0
    %415 = vmatmul.mubr.f32.gmra.mxu0 %v259
    %v416 = vpop.f32.mrf.mxu0
    %v417 = vadd.f32 %v283, %v416
    %v418 = vpop.f32.mrf.mxu0
    %419 = vmatprep.mubr.f32.mxu0 0.0
    %420 = vmatmul.mubr.f32.gmra.mxu0 %v260
    %v421 = vpop.f32.mrf.mxu0
    %v422 = vadd.f32 %v283, %v421
    %v423 = vpop.f32.mrf.mxu0
    %424 = vmatprep.mubr.f32.mxu0 0.0
    %425 = vmatmul.mubr.f32.gmra.mxu0 %v261
    %v426 = vpop.f32.mrf.mxu0
    %v427 = vadd.f32 %v283, %v426
    %v428 = vpop.f32.mrf.mxu0
    %429 = vdwg.mxu0
    %v430 = vtanh.pop %v352
    %v431 = vtanh.pop %v357
    %v432 = vtanh.pop %v362
    %v433 = vtanh.pop %v367
    %v434 = vtanh.pop %v372
    %v435 = vtanh.pop %v377
    %v436 = vtanh.pop %v382
    %v437 = vtanh.pop %v387
    %v438 = vtanh.pop %v392
    %v439 = vtanh.pop %v397
    %v440 = vtanh.pop %v402
    %v441 = vtanh.pop %v407
    %v442 = vtanh.pop %v412
    %v443 = vtanh.pop %v417
    %v444 = vtanh.pop %v422
    %v445 = vtanh.pop %v427
    %v446 = vld [vmem:[%s5] sm:$0x3]
    %v447 = vld [vmem:[%s6] sm:$0x3]
    %449 = vset.pattern.permute.xlu0 0
    %450 = vperm.xlu0 %449, %v447
    %v451 = vpop.permute.xlu0 %450
    %453 = vmatprep.subr.mxu0 0.0
    %454 = vmatpush1.xpose.msra.mxu0 %v445
    %455 = vmatprep.subr.mxu0 0.0
    %456 = vmatpush1.xpose.msra.mxu0 %v444
    %457 = vmatprep.subr.mxu0 0.0
    %458 = vmatpush1.xpose.msra.mxu0 %v443
    %459 = vmatprep.subr.mxu0 0.0
    %460 = vmatpush1.xpose.msra.mxu0 %v442
    %461 = vmatprep.subr.mxu0 0.0
    %462 = vmatpush1.xpose.msra.mxu0 %v441
    %463 = vmatprep.subr.mxu0 0.0
    %464 = vmatpush1.xpose.msra.mxu0 %v440
    %465 = vmatprep.subr.mxu0 0.0
    %466 = vmatpush1.xpose.msra.mxu0 %v439
    %467 = vmatprep.subr.mxu0 0.0
    %468 = vmatpush1.xpose.msra.mxu0 %v438
    %469 = vmatprep.subr.mxu0 0.0
    %470 = vmatpush1.xpose.msra.mxu0 %v437
    %471 = vmatprep.subr.mxu0 0.0
    %472 = vmatpush1.xpose.msra.mxu0 %v436
    %473 = vmatprep.subr.mxu0 0.0
    %474 = vmatpush1.xpose.msra.mxu0 %v435
    %475 = vmatprep.subr.mxu0 0.0
    %476 = vmatpush1.xpose.msra.mxu0 %v434
    %477 = vmatprep.subr.mxu0 0.0
    %478 = vmatpush1.xpose.msra.mxu0 %v433
    %479 = vmatprep.subr.mxu0 0.0
    %480 = vmatpush1.xpose.msra.mxu0 %v432
    %481 = vmatprep.subr.mxu0 0.0
    %482 = vmatpush1.xpose.msra.mxu0 %v431
    %483 = vmatprep.subr.mxu0 0.0
    %484 = vmatpush1.xpose.msra.mxu0 %v430
    %485 = vmatprep.subr.mxu0 0.0
    %486 = vmatpush2.xpose.msra.mxu0 0.0
    %487 = vmatprep.subr.mxu0 0.0
    %488 = vmatpush2.xpose.msra.mxu0 0.0
    %489 = vmatprep.subr.mxu0 0.0
    %490 = vmatpush2.xpose.msra.mxu0 0.0
    %491 = vmatprep.subr.mxu0 0.0
    %492 = vmatpush2.xpose.msra.mxu0 0.0
    %493 = vmatprep.subr.mxu0 0.0
    %494 = vmatpush2.xpose.msra.mxu0 0.0
    %495 = vmatprep.subr.mxu0 0.0
    %496 = vmatpush2.xpose.msra.mxu0 0.0
    %497 = vmatprep.subr.mxu0 0.0
    %498 = vmatpush2.xpose.msra.mxu0 0.0
    %499 = vmatprep.subr.mxu0 0.0
    %500 = vmatpush2.xpose.msra.mxu0 0.0
    %501 = vmatprep.subr.mxu0 0.0
    %502 = vmatpush2.xpose.msra.mxu0 0.0
    %503 = vmatprep.subr.mxu0 0.0
    %504 = vmatpush2.xpose.msra.mxu0 0.0
    %505 = vmatprep.subr.mxu0 0.0
    %506 = vmatpush2.xpose.msra.mxu0 0.0
    %507 = vmatprep.subr.mxu0 0.0
    %508 = vmatpush2.xpose.msra.mxu0 0.0
    %509 = vmatprep.subr.mxu0 0.0
    %510 = vmatpush2.xpose.msra.mxu0 0.0
    %511 = vmatprep.subr.mxu0 0.0
    %512 = vmatpush2.xpose.msra.mxu0 0.0
    %513 = vmatprep.subr.mxu0 0.0
    %514 = vmatpush2.xpose.msra.mxu0 0.0
    %515 = vmatprep.subr.mxu0 0.0
    %516 = vmatpush2.xpose.msra.mxu0 0.0
    %517 = vmatprep.mubr.f32.mxu0 0.0
    %518 = vmatmul.mubr.f32.gmra.mxu0 %v446
    %v519 = vpop.f32.mrf.mxu0
    %v520 = vadd.f32 %v451, %v519
    %v521 = vpop.f32.mrf.mxu0
    %522 = vdwg.mxu0
    %523 = vst [vmem:[#allocation2] sm:$0x3] %v520
    // Predicated region
    $region30: #{tpu_custom_call.1} parent=1 // pred_check
      _
    $region31: #{tpu_custom_call.1} parent=1 // pred_check_branch
      %525 = sbr.rel (0) target = $region33
    $region32: #{tpu_custom_call.1} parent=1 // pred_region
      %s527 = ssub.s32 32, 32
      %528 = vsyncadd [#allocation3], %s527
      %s530 = sshll.u32 [#allocation2], 4
      %s531 = int_to_ptr.vmem [resolvable:$true] %s530
      %533 = dma.vmem_to_hbm [thread:$0]  %s531, 32, %s7, [#allocation3]
    $region33: #{tpu_custom_call.1} parent=1 // pred_fallthru
      _
    // Predicated region
    $region34: #{tpu_custom_call.1} parent=1 // pred_check
      _
    $region35: #{tpu_custom_call.1} parent=1 // pred_check_branch
      %535 = sbr.rel (0) target = $region37
    $region36: #{tpu_custom_call.1} parent=1 // pred_region
      %536 = dma.done [#allocation3], 32
    $region37: #{tpu_custom_call.1} parent=1 // pred_fallthru
      _
    %537 = vsyncpa [#allocation3], 1

</llo_original>
